<compile_context>
chip_gen: v7x
topology: tpu7x:2x2x1
jax: 0.10.0
libtpu: 0.0.40
codegen_flags: <defaults>
</compile_context>

<pallas_src>
import math

import jax
import jax.numpy as jnp
from jax.experimental import pallas as pl
from jax.experimental.pallas import tpu as pltpu


def _round_up(x, m):
    return ((x + m - 1) // m) * m


def _vmem_cap_bytes():
    # Physical VMEM per core (64 MiB on v7x, 128 MiB on v5e/v6e), with headroom.
    try:
        cap = int(pltpu.get_tpu_info().vmem_capacity_bytes)
    except Exception:
        cap = 64 * 1024 * 1024  # safe (v7x-sized) fallback
    return max(int(cap * 0.85), 32 * 1024 * 1024)


# ----------------------------------------------------------------- kernels
def _make_fused_kernel(with_bias):
    """out = adj @ (x @ w) (+ bias), support tile recomputed per (i, k) step."""

    def kernel(adj_ref, x_ref, w_ref, *rest):
        if with_bias:
            b_ref, o_ref = rest
        else:
            (o_ref,) = rest
        k = pl.program_id(1)

        @pl.when(k == 0)
        def _():
            o_ref[...] = jnp.zeros_like(o_ref)

        # support tile (tk, fp): bf16 MXU operands, f32 accumulation.
        support = jnp.dot(
            x_ref[...], w_ref[...], preferred_element_type=jnp.float32
        ).astype(jnp.bfloat16)
        o_ref[...] += jnp.dot(
            adj_ref[...], support, preferred_element_type=jnp.float32
        )

        if with_bias:
            @pl.when(k == pl.num_programs(1) - 1)
            def _():
                o_ref[...] += b_ref[...]

    return kernel


def _support_kernel(x_ref, w_ref, s_ref):
    # support tile = X_tile @ W   (bf16 operands, f32 MXU accumulation)
    s_ref[...] = jnp.dot(
        x_ref[...], w_ref[...], preferred_element_type=jnp.float32
    ).astype(s_ref.dtype)


def _make_aggregate_kernel(with_bias):
    """out = adj @ support (+ bias), support streamed as (tk, fp) blocks."""

    def kernel(adj_ref, s_ref, *rest):
        if with_bias:
            b_ref, o_ref = rest
        else:
            (o_ref,) = rest
        k = pl.program_id(1)

        @pl.when(k == 0)
        def _():
            o_ref[...] = jnp.zeros_like(o_ref)

        o_ref[...] += jnp.dot(
            adj_ref[...], s_ref[...], preferred_element_type=jnp.float32
        )

        if with_bias:
            @pl.when(k == pl.num_programs(1) - 1)
            def _():
                o_ref[...] += b_ref[...]

    return kernel


# ----------------------------------------------------------------- wrapper
def graph_convolution(x, adj, weight, bias=None, *, tm=512, tk=1024,
                      fuse_support=None):
    """Pallas GCN forward.

    x: [N, Fin], adj: [N, N] dense (pass it pre-cast to bf16 once at model
    setup to avoid a per-call HBM cast pass; any float dtype is accepted and
    streamed as-is), weight: [Fin, Fout], bias: [Fout] or None.
    Returns [N, Fout] float32.
    """
    n, fin = x.shape
    fout = weight.shape[1]
    assert adj.shape == (n, n)
    assert weight.shape[0] == fin

    # ---- tiling / padding ---------------------------------------------------
    align = 256  # 256-multiples fill the v6e/v7x 256-wide MXU passes
    tm = max(align, min(tm, _round_up(n, align)))
    tk = max(align, min(tk, _round_up(n, align)))
    n_pad = _round_up(n, math.lcm(tm, tk))
    fp = _round_up(max(fout, 128), 128)  # lane-dense output stores

    x_bf = x.astype(jnp.bfloat16)        # tiny cast (N*Fin) vs adj stream
    w_bf = weight.astype(jnp.bfloat16)
    if n_pad != n:
        x_bf = jnp.pad(x_bf, ((0, n_pad - n), (0, 0)))
        adj = jnp.pad(adj, ((0, n_pad - n), (0, n_pad - n)))
    w_pad = jnp.pad(w_bf, ((0, 0), (0, fp - fout))) if fp != fout else w_bf

    bias_pad = None
    if bias is not None:
        bias_pad = jnp.zeros((1, fp), jnp.float32).at[0, :fout].set(
            bias.astype(jnp.float32))

    if fuse_support is None:
        # Fusing recomputes X@W once per row tile: extra MXU work ratio is
        # fin/tm (<= 1), which stays hidden under the adj HBM stream, and it
        # removes the support HBM round trip entirely.
        fuse_support = (fin <= tm) and (fin * fp * 2 <= 8 * 1024 * 1024)

    grid = (n_pad // tm, n_pad // tk)  # rows parallel, K-reduction last
    adj_spec = pl.BlockSpec((tm, tk), lambda i, k: (i, k))
    out_spec = pl.BlockSpec((tm, fp), lambda i, k: (i, 0))  # resident f32 acc
    bias_spec = pl.BlockSpec((1, fp), lambda i, k: (0, 0))
    adj_bytes = jnp.dtype(adj.dtype).itemsize
    vmem_cap = _vmem_cap_bytes()

    if fuse_support:
        # ---- single fused kernel: out = adj @ (x @ w) (+ bias) --------------
        x_spec = pl.BlockSpec((tk, fin), lambda i, k: (k, 0))
        w_spec = pl.BlockSpec((fin, fp), lambda i, k: (0, 0))  # weight resident
        need = (2 * tm * tk * adj_bytes       # adj double-buffer
                + 2 * tk * fin * 2            # x double-buffer
                + 2 * fin * fp * 2            # weight
                + 2 * fp * 4                  # bias
                + 2 * tm * fp * 4)            # output/accumulator
        cost = pl.CostEstimate(
            flops=2 * n_pad * n_pad * fp
                  + (n_pad // tm) * 2 * n_pad * fin * fp + n_pad * fp,
            transcendentals=0,
            bytes_accessed=n_pad * n_pad * adj_bytes
                           + (n_pad // tm) * n_pad * fin * 2
                           + fin * fp * 2 + n_pad * fp * 4 + fp * 4)
        in_specs = [adj_spec, x_spec, w_spec]
        args = [adj, x_bf, w_pad]
        if bias is not None:
            in_specs.append(bias_spec)
            args.append(bias_pad)
        out_pad = pl.pallas_call(
            _make_fused_kernel(bias is not None),
            out_shape=jax.ShapeDtypeStruct((n_pad, fp), jnp.float32),
            grid=grid,
            in_specs=in_specs,
            out_specs=out_spec,
            compiler_params=pltpu.CompilerParams(
                dimension_semantics=("parallel", "arbitrary"),
                vmem_limit_bytes=min(max(need + 4 * 1024 * 1024,
                                         16 * 1024 * 1024), vmem_cap)),
            cost_estimate=cost,
        )(*args)
    else:
        # ---- two kernels: support = x @ w ; out = adj @ support (+ bias) ----
        # TODO(synk): very large Fin*Fout would additionally need K/N tiling of
        # the resident weight block in kernel 1.
        row_tile = tm
        k1_need = 2 * (row_tile * fin * 2 + fin * fp * 2 + row_tile * fp * 2)
        support = pl.pallas_call(
            _support_kernel,
            out_shape=jax.ShapeDtypeStruct((n_pad, fp), jnp.bfloat16),
            grid=(n_pad // row_tile,),
            in_specs=[pl.BlockSpec((row_tile, fin), lambda i: (i, 0)),
                      pl.BlockSpec((fin, fp), lambda i: (0, 0))],
            out_specs=pl.BlockSpec((row_tile, fp), lambda i: (i, 0)),
            compiler_params=pltpu.CompilerParams(
                dimension_semantics=("parallel",),
                vmem_limit_bytes=min(max(k1_need + 4 * 1024 * 1024,
                                         16 * 1024 * 1024), vmem_cap)),
        )(x_bf, w_pad)

        sup_spec = pl.BlockSpec((tk, fp), lambda i, k: (k, 0))
        need = (2 * tm * tk * adj_bytes + 2 * tk * fp * 2
                + 2 * fp * 4 + 2 * tm * fp * 4)
        cost = pl.CostEstimate(
            flops=2 * n_pad * n_pad * fp + n_pad * fp,
            transcendentals=0,
            bytes_accessed=n_pad * n_pad * adj_bytes
                           + (n_pad // tm) * n_pad * fp * 2
                           + n_pad * fp * 4 + fp * 4)
        in_specs = [adj_spec, sup_spec]
        args = [adj, support]
        if bias is not None:
            in_specs.append(bias_spec)
            args.append(bias_pad)
        out_pad = pl.pallas_call(
            _make_aggregate_kernel(bias is not None),
            out_shape=jax.ShapeDtypeStruct((n_pad, fp), jnp.float32),
            grid=grid,
            in_specs=in_specs,
            out_specs=out_spec,
            compiler_params=pltpu.CompilerParams(
                dimension_semantics=("parallel", "arbitrary"),
                vmem_limit_bytes=min(max(need + 4 * 1024 * 1024,
                                         16 * 1024 * 1024), vmem_cap)),
            cost_estimate=cost,
        )(*args)

    return out_pad[:n, :fout]


# ----------------------------------------------------------------- self-test
def _ref_gcn(x, adj, w, b):
    """Reference with the same bf16-rounding points as the kernel (f32 accum)."""
    sup = (x.astype(jnp.bfloat16).astype(jnp.float32)
           @ w.astype(jnp.bfloat16).astype(jnp.float32)
           ).astype(jnp.bfloat16).astype(jnp.float32)
    out = adj.astype(jnp.float32) @ sup
    if b is not None:
        out = out + b[None, :]
    return out


if __name__ == "__main__":
    # Small shapes consistent with the module: N nodes, in_features -> out_features.
    N, IN_F, OUT_F = 512, 32, 16

    key = jax.random.PRNGKey(0)
    k_x, k_adj, k_w, k_b = jax.random.split(key, 4)

    # Deterministic parameter init mirroring reset_parameters():
    # uniform(-stdv, stdv) with stdv = 1/sqrt(out_features)
    stdv = 1.0 / math.sqrt(OUT_F)
    weight = jax.random.uniform(k_w, (IN_F, OUT_F), jnp.float32, -stdv, stdv)
    bias = jax.random.uniform(k_b, (OUT_F,), jnp.float32, -stdv, stdv)

    # Dense (row-normalized) adjacency standing in for torch.spmm's sparse adj.
    x = jax.random.normal(k_x, (N, IN_F), jnp.float32)
    adj_raw = (jax.random.uniform(k_adj, (N, N)) < 0.2).astype(jnp.float32)
    adj_raw = adj_raw + jnp.eye(N, dtype=jnp.float32)
    adj = adj_raw / jnp.sum(adj_raw, axis=1, keepdims=True)

    # Model-setup-time cast (GCN reuses the same adj every layer/step): pay the
    # bf16 cast once here instead of an extra HBM pass inside every call.
    adj_bf16 = jax.block_until_ready(adj.astype(jnp.bfloat16))

    ref_exact = adj @ (x @ weight) + bias[None, :]
    ref_bf16 = _ref_gcn(x, adj_bf16, weight, bias)

    # 1) fused path (default), tiles chosen so the grid is genuinely 2x2.
    out = jax.block_until_ready(
        graph_convolution(x, adj_bf16, weight, bias, tm=256, tk=256))
    assert out.shape == (N, OUT_F) and out.dtype == jnp.float32
    assert jnp.allclose(out, ref_bf16, atol=5e-3, rtol=5e-3), float(
        jnp.max(jnp.abs(out - ref_bf16)))
    assert jnp.allclose(out, ref_exact, atol=2e-2, rtol=2e-2), float(
        jnp.max(jnp.abs(out - ref_exact)))

    # 2) bias=None path.
    out_nb = jax.block_until_ready(
        graph_convolution(x, adj_bf16, weight, None, tm=256, tk=256))
    assert jnp.allclose(out_nb, _ref_gcn(x, adj_bf16, weight, None),
                        atol=5e-3, rtol=5e-3)

    # 3) two-kernel (non-fused) path.
    out_2k = jax.block_until_ready(
        graph_convolution(x, adj_bf16, weight, bias, tm=256, tk=256,
                          fuse_support=False))
    assert jnp.allclose(out_2k, ref_bf16, atol=5e-3, rtol=5e-3)

    # 4) non-tile-multiple N and Fout (exercises zero-padding), f32 adj stream.
    N2, F2_IN, F2_OUT = 200, 48, 96
    k_x2, k_a2, k_w2, k_b2 = jax.random.split(jax.random.PRNGKey(1), 4)
    stdv2 = 1.0 / math.sqrt(F2_OUT)
    w2 = jax.random.uniform(k_w2, (F2_IN, F2_OUT), jnp.float32, -stdv2, stdv2)
    b2 = jax.random.uniform(k_b2, (F2_OUT,), jnp.float32, -stdv2, stdv2)
    x2 = jax.random.normal(k_x2, (N2, F2_IN), jnp.float32)
    a2 = (jax.random.uniform(k_a2, (N2, N2)) < 0.3).astype(jnp.float32)
    a2 = a2 + jnp.eye(N2, dtype=jnp.float32)
    a2 = a2 / jnp.sum(a2, axis=1, keepdims=True)
    out2 = jax.block_until_ready(graph_convolution(x2, a2, w2, b2))
    assert out2.shape == (N2, F2_OUT)
    assert jnp.allclose(out2, _ref_gcn(x2, a2, w2, b2), atol=5e-3, rtol=5e-3)
    assert jnp.allclose(out2, a2 @ (x2 @ w2) + b2[None, :],
                        atol=2e-2, rtol=2e-2)

    print("KERNEL_OK")
</pallas_src>

<mosaic_0001>
module attributes {stable_mosaic.version = 11 : i64} {
  func.func @kernel(%arg0: i32, %arg1: i32, %arg2: memref<256x256xbf16, #tpu.memory_space<vmem>>, %arg3: memref<256x32xbf16, #tpu.memory_space<vmem>>, %arg4: memref<32x128xbf16, #tpu.memory_space<vmem>>, %arg5: memref<1x128xf32, #tpu.memory_space<vmem>>, %arg6: memref<256x128xf32, #tpu.memory_space<vmem>>) attributes {dimension_semantics = [#tpu.dimension_semantics<parallel>, #tpu.dimension_semantics<arbitrary>], iteration_bounds = array<i64: 2, 2>, scalar_prefetch = 0 : i64, scratch_operands = 0 : i64, tpu.core_type = #tpu.core_type<tc>, window_params = [{transform_indices = @transform_0, window_bounds = array<i64: 256, 256>}, {transform_indices = @transform_1, window_bounds = array<i64: 256, 32>}, {pipeline_mode = #tpu.pipeline_mode<synchronous>, transform_indices = @transform_2, window_bounds = array<i64: 32, 128>}, {pipeline_mode = #tpu.pipeline_mode<synchronous>, transform_indices = @transform_3, window_bounds = array<i64: 1, 128>}, {transform_indices = @transform_4, window_bounds = array<i64: 256, 128>}]} {
    %c0_i32 = arith.constant 0 : i32
    %0 = arith.cmpi eq, %arg1, %c0_i32 : i32
    %1 = arith.extui %0 : i1 to i32
    %c0_i32_0 = arith.constant 0 : i32
    %2 = arith.cmpi ne, %1, %c0_i32_0 : i32
    scf.if %2 {
      %cst_12 = arith.constant 0.000000e+00 : f32
      %15 = vector.broadcast %cst_12 : f32 to vector<256x128xf32>
      %c0_13 = arith.constant 0 : index
      %c0_14 = arith.constant 0 : index
      %16 = vector.load %arg6[%c0_13, %c0_14] : memref<256x128xf32, #tpu.memory_space<vmem>>, vector<256x128xf32>
      tpu.vector_store %arg6[%c0_13, %c0_14], %15 {strides = array<i32>} : memref<256x128xf32, #tpu.memory_space<vmem>>, vector<256x128xf32>,
    } else {
    }
    %c0 = arith.constant 0 : index
    %c0_1 = arith.constant 0 : index
    %3 = vector.load %arg3[%c0, %c0_1] : memref<256x32xbf16, #tpu.memory_space<vmem>>, vector<256x32xbf16>
    %c0_2 = arith.constant 0 : index
    %c0_3 = arith.constant 0 : index
    %4 = vector.load %arg4[%c0_2, %c0_3] : memref<32x128xbf16, #tpu.memory_space<vmem>>, vector<32x128xbf16>
    %cst = arith.constant dense<0.000000e+00> : vector<256x128xf32>
    %5 = tpu.matmul %3, %4, %cst {dimension_numbers = #tpu.dot_dimension_numbers<[1], [0], [0], [1], [0, 0, 1, 1], [], []>} : vector<256x32xbf16>, vector<32x128xbf16>, vector<256x128xf32> -> vector<256x128xf32>
    %6 = arith.truncf %5 : vector<256x128xf32> to vector<256x128xbf16>
    %c0_4 = arith.constant 0 : index
    %c0_5 = arith.constant 0 : index
    %7 = vector.load %arg6[%c0_4, %c0_5] : memref<256x128xf32, #tpu.memory_space<vmem>>, vector<256x128xf32>
    %c0_6 = arith.constant 0 : index
    %c0_7 = arith.constant 0 : index
    %8 = vector.load %arg2[%c0_6, %c0_7] : memref<256x256xbf16, #tpu.memory_space<vmem>>, vector<256x256xbf16>
    %cst_8 = arith.constant dense<0.000000e+00> : vector<256x128xf32>
    %9 = tpu.matmul %8, %6, %cst_8 {dimension_numbers = #tpu.dot_dimension_numbers<[1], [0], [0], [1], [0, 0, 1, 1], [], []>} : vector<256x256xbf16>, vector<256x128xbf16>, vector<256x128xf32> -> vector<256x128xf32>
    %10 = arith.addf %7, %9 : vector<256x128xf32>
    %c0_9 = arith.constant 0 : index
    %c0_10 = arith.constant 0 : index
    %11 = vector.load %arg6[%c0_9, %c0_10] : memref<256x128xf32, #tpu.memory_space<vmem>>, vector<256x128xf32>
    tpu.vector_store %arg6[%c0_9, %c0_10], %10 {strides = array<i32>} : memref<256x128xf32, #tpu.memory_space<vmem>>, vector<256x128xf32>,
    %c1_i32 = arith.constant 1 : i32
    %12 = arith.cmpi eq, %arg1, %c1_i32 : i32
    %13 = arith.extui %12 : i1 to i32
    %c0_i32_11 = arith.constant 0 : i32
    %14 = arith.cmpi ne, %13, %c0_i32_11 : i32
    scf.if %14 {
      %c0_12 = arith.constant 0 : index
      %c0_13 = arith.constant 0 : index
      %15 = vector.load %arg6[%c0_12, %c0_13] : memref<256x128xf32, #tpu.memory_space<vmem>>, vector<256x128xf32>
      %c0_14 = arith.constant 0 : index
      %c0_15 = arith.constant 0 : index
      %16 = vector.load %arg5[%c0_14, %c0_15] : memref<1x128xf32, #tpu.memory_space<vmem>>, vector<1x128xf32>
      %17 = vector.broadcast %16 : vector<1x128xf32> to vector<256x128xf32>
      %18 = arith.addf %15, %17 : vector<256x128xf32>
      %c0_16 = arith.constant 0 : index
      %c0_17 = arith.constant 0 : index
      %19 = vector.load %arg6[%c0_16, %c0_17] : memref<256x128xf32, #tpu.memory_space<vmem>>, vector<256x128xf32>
      tpu.vector_store %arg6[%c0_16, %c0_17], %18 {strides = array<i32>} : memref<256x128xf32, #tpu.memory_space<vmem>>, vector<256x128xf32>,
    } else {
    }
    return
  }
  func.func @transform_0(%arg0: i32, %arg1: i32) -> (i32, i32) {
    %c0_i32 = arith.constant 0 : i32
    return %arg0, %arg1 : i32, i32
  }
  func.func @transform_1(%arg0: i32, %arg1: i32) -> (i32, i32) {
    %c0_i32 = arith.constant 0 : i32
    %c0_i32_0 = arith.constant 0 : i32
    return %arg1, %c0_i32 : i32, i32
  }
  func.func @transform_2(%arg0: i32, %arg1: i32) -> (i32, i32) {
    %c0_i32 = arith.constant 0 : i32
    %c0_i32_0 = arith.constant 0 : i32
    %c0_i32_1 = arith.constant 0 : i32
    return %c0_i32, %c0_i32_0 : i32, i32
  }
  func.func @transform_3(%arg0: i32, %arg1: i32) -> (i32, i32) {
    %c0_i32 = arith.constant 0 : i32
    %c0_i32_0 = arith.constant 0 : i32
    %c0_i32_1 = arith.constant 0 : i32
    return %c0_i32, %c0_i32_0 : i32, i32
  }
  func.func @transform_4(%arg0: i32, %arg1: i32) -> (i32, i32) {
    %c0_i32 = arith.constant 0 : i32
    %c0_i32_0 = arith.constant 0 : i32
    return %arg0, %c0_i32 : i32, i32
  }
}

</mosaic_0001>

<llo_original>
// kernel: tpu_custom_call.1
$region0: #{tpu_custom_call.1}
  #allocation0 [shape = 'u32[]', space=smem, size = 0x4, offset = 0x4, fixed_abs, tag = 'smem constant byte address 0x4 - core index']
  #allocation1 [shape = 'u32[144,128]{1,0:T(1,128)}', space=vmem, size = 0x12000, scoped, tag = 'internal scratch']
  %s0 = inlined_call_operand.hbm [shape: bf16[512,512], index: 0, kind: input, shape index: {}]
  %s1 = inlined_call_operand.vmem [shape: bf16[512,32], index: 1, kind: input, shape index: {}]
  %s2 = inlined_call_operand.vmem [shape: bf16[32,128], index: 2, kind: input, shape index: {}]
  %s3 = inlined_call_operand.vmem [shape: f32[1,128], index: 3, kind: input, shape index: {}]
  %s4 = inlined_call_operand.hbm [shape: f32[512,128], index: 4, kind: output, shape index: {}]
  %s5 = sld [smem:[#allocation0]]
  $region61: #{tpu_custom_call.1} parent=0
    _
  %s7 = ssub.s32 1, %s5
  %s8 = scalar_select 0, %s7, %s5
  $region1: #{tpu_custom_call.1} parent=0
    #allocation2 [shape = 'u8[262144]{0}', space=vmem, size = 0x40000, scoped, tag = 'input window, operand 0']
    #allocation3 [shape = 's32[2]{0}', space=sflag, size = 0x8, scoped, tag = 'scoped memory for tpu_custom_call.1']
    #allocation4 [shape = 's32[2]{0}', space=sflag, size = 0x8, scoped, tag = 'scoped memory for tpu_custom_call.1']
    #allocation5 [shape = 'u8[262144]{0}', space=vmem, size = 0x40000, scoped, tag = 'output window, operand 0']
    %9 = vsyncpa [#allocation3], 0
    %s10 = scalar_lea.sflag [#allocation3], 1
    %11 = vsyncpa %s10, 0
    %12 = vsyncpa [#allocation4], 0
    %s13 = scalar_lea.sflag [#allocation4], 1
    %14 = vsyncpa %s13, 0
    loop: start=0, step=1, limit=6
    $region2: #{tpu_custom_call.1} parent=1 // loop_pre_header
      _
    $region3: #{tpu_custom_call.1} parent=1 // loop_header
      %s16 = sphi 0, %s20
      %p17 = scmp.ge.s32.totalorder %s16, 6
      %s23 = sphi 0, %s35
      %s24 = sphi 0, %s31
      %s25 = sphi 0, %s23
      %s26 = sphi 0, %s24
      %s27 = sphi 0, %s25
      %s28 = sphi 0, %s26
      %s40 = sphi 0, %s42
      %s43 = sphi 0, %s40
      %s44 = sphi 0, %s43
      %s60 = sphi 0, %s44
      %s66 = sphi 0, %s68
      %s69 = sphi 0, %s66
      %s70 = sphi 0, %s69
      %s86 = sphi 0, %s70
      %s90 = sphi 0, %s90
      %s92 = sphi 0, %s90
      %s93 = sphi 0, %s92
      %s107 = sphi 0, %s93
      %s111 = sphi 0, %s111
      %s113 = sphi 0, %s111
      %s114 = sphi 0, %s113
      %s128 = sphi 0, %s114
      %s134 = sphi 0, %s136
      %s137 = sphi 0, %s134
      %s138 = sphi 0, %s137
      %s154 = sphi 0, %s138
    $region4: #{tpu_custom_call.1} parent=1 // loop_header_branch
      %19 = sbr.rel (%p17) target = $region8
    $region5: #{tpu_custom_call.1} parent=1 // loop_body
      %s21 = ssub.s32 %s16, 1
      %s22 = ssub.s32 %s16, 2
      %s29 = sadd.s32 1, %s24
      %p30 = scmp.ge.s32.totalorder %s29, 2
      %s31 = scalar_select %p30, 0, %s29
      %s32 = sadd.s32 1, %s23
      %s33 = scalar_select %p30, %s32, %s23
      %p34 = scmp.ge.s32.totalorder %s33, 2
      %s35 = scalar_select %p34, 0, %s33
      %s36 = ssub.s32 %s23, %s35
      %s37 = ssub.s32 %s24, %s31
      %s38 = sor.u32 %s36, %s37
      %p39 = scmp.eq.s32.totalorder %s38, 0
      %s41 = sadd.s32 %s40, 1
      %s42 = scalar_select %p39, %s40, %s41
      %p45 = pneg %p39
      %p46 = scmp.eq.s32.totalorder %s16, 3
      %p47 = por %p45, %p46
      %p48 = scmp.ne.s32.totalorder %s40, %s43
      %p49 = scmp.eq.s32.totalorder %s16, 0
      %p50 = por %p48, %p49
      %p51 = scmp.ne.s32.totalorder %s40, %s43
      %p52 = scmp.eq.s32.totalorder %s21, 3
      %p53 = por %p51, %p52
      %p54 = scmp.ne.s32.totalorder %s43, %s44
      %p55 = scmp.eq.s32.totalorder %s21, 0
      %p56 = por %p54, %p55
      %p57 = scmp.ne.s32.totalorder %s43, %s44
      %p58 = scmp.eq.s32.totalorder %s22, 3
      %p59 = por %p57, %p58
      %p61 = scmp.ne.s32.totalorder %s44, %s60
      %p62 = scmp.eq.s32.totalorder %s22, 0
      %p63 = por %p61, %p62
      %s64 = ssub.s32 %s24, %s31
      %p65 = scmp.eq.s32.totalorder %s64, 0
      %s67 = sadd.s32 %s66, 1
      %s68 = scalar_select %p65, %s66, %s67
      %p71 = pneg %p65
      %p72 = scmp.eq.s32.totalorder %s16, 3
      %p73 = por %p71, %p72
      %p74 = scmp.ne.s32.totalorder %s66, %s69
      %p75 = scmp.eq.s32.totalorder %s16, 0
      %p76 = por %p74, %p75
      %p77 = scmp.ne.s32.totalorder %s66, %s69
      %p78 = scmp.eq.s32.totalorder %s21, 3
      %p79 = por %p77, %p78
      %p80 = scmp.ne.s32.totalorder %s69, %s70
      %p81 = scmp.eq.s32.totalorder %s21, 0
      %p82 = por %p80, %p81
      %p83 = scmp.ne.s32.totalorder %s69, %s70
      %p84 = scmp.eq.s32.totalorder %s22, 3
      %p85 = por %p83, %p84
      %p87 = scmp.ne.s32.totalorder %s70, %s86
      %p88 = scmp.eq.s32.totalorder %s22, 0
      %p89 = por %p87, %p88
      %s91 = sadd.s32 %s90, 1
      %p94 = scmp.eq.s32.totalorder %s16, 3
      %p95 = scmp.ne.s32.totalorder %s90, %s92
      %p96 = scmp.eq.s32.totalorder %s16, 0
      %p97 = por %p95, %p96
      %p98 = scmp.ne.s32.totalorder %s90, %s92
      %p99 = scmp.eq.s32.totalorder %s21, 3
      %p100 = por %p98, %p99
      %p101 = scmp.ne.s32.totalorder %s92, %s93
      %p102 = scmp.eq.s32.totalorder %s21, 0
      %p103 = por %p101, %p102
      %p104 = scmp.ne.s32.totalorder %s92, %s93
      %p105 = scmp.eq.s32.totalorder %s22, 3
      %p106 = por %p104, %p105
      %p108 = scmp.ne.s32.totalorder %s93, %s107
      %p109 = scmp.eq.s32.totalorder %s22, 0
      %p110 = por %p108, %p109
      %s112 = sadd.s32 %s111, 1
      %p115 = scmp.eq.s32.totalorder %s16, 3
      %p116 = scmp.ne.s32.totalorder %s111, %s113
      %p117 = scmp.eq.s32.totalorder %s16, 0
      %p118 = por %p116, %p117
      %p119 = scmp.ne.s32.totalorder %s111, %s113
      %p120 = scmp.eq.s32.totalorder %s21, 3
      %p121 = por %p119, %p120
      %p122 = scmp.ne.s32.totalorder %s113, %s114
      %p123 = scmp.eq.s32.totalorder %s21, 0
      %p124 = por %p122, %p123
      %p125 = scmp.ne.s32.totalorder %s113, %s114
      %p126 = scmp.eq.s32.totalorder %s22, 3
      %p127 = por %p125, %p126
      %p129 = scmp.ne.s32.totalorder %s114, %s128
      %p130 = scmp.eq.s32.totalorder %s22, 0
      %p131 = por %p129, %p130
      %s132 = ssub.s32 %s23, %s35
      %p133 = scmp.eq.s32.totalorder %s132, 0
      %s135 = sadd.s32 %s134, 1
      %s136 = scalar_select %p133, %s134, %s135
      %p139 = pneg %p133
      %p140 = scmp.eq.s32.totalorder %s16, 3
      %p141 = por %p139, %p140
      %p142 = scmp.ne.s32.totalorder %s134, %s137
      %p143 = scmp.eq.s32.totalorder %s16, 0
      %p144 = por %p142, %p143
      %p145 = scmp.ne.s32.totalorder %s134, %s137
      %p146 = scmp.eq.s32.totalorder %s21, 3
      %p147 = por %p145, %p146
      %p148 = scmp.ne.s32.totalorder %s137, %s138
      %p149 = scmp.eq.s32.totalorder %s21, 0
      %p150 = por %p148, %p149
      %p151 = scmp.ne.s32.totalorder %s137, %s138
      %p152 = scmp.eq.s32.totalorder %s22, 3
      %p153 = por %p151, %p152
      %p155 = scmp.ne.s32.totalorder %s138, %s154
      %p156 = scmp.eq.s32.totalorder %s22, 0
      %p157 = por %p155, %p156
      %p158 = scmp.le.s32.totalorder 1, %s16
      %p159 = scmp.lt.s32.totalorder %s16, 5
      %p160 = pnand %p158, %p159
      %p161 = pneg %p160
      // Predicated region
      $region9: #{tpu_custom_call.1} parent=5 // pred_check
        _
      $region10: #{tpu_custom_call.1} parent=5 // pred_check_branch
        %163 = sbr.rel (%p160) target = $region12
      $region11: #{tpu_custom_call.1} parent=5 // pred_region
        %s164 = ssub.s32 %s16, 1
        // Predicated region
        $region13: #{tpu_custom_call.1} parent=11 // pred_check
          %p165 = pneg %p103
        $region14: #{tpu_custom_call.1} parent=11 // pred_check_branch
          %167 = sbr.rel (%p165) target = $region16
        $region15: #{tpu_custom_call.1} parent=11 // pred_region
          _
        $region16: #{tpu_custom_call.1} parent=11 // pred_fallthru
          _
        // Predicated region
        $region17: #{tpu_custom_call.1} parent=11 // pred_check
          %p168 = pneg %p124
        $region18: #{tpu_custom_call.1} parent=11 // pred_check_branch
          %170 = sbr.rel (%p168) target = $region20
        $region19: #{tpu_custom_call.1} parent=11 // pred_region
          _
        $region20: #{tpu_custom_call.1} parent=11 // pred_fallthru
          _
      $region12: #{tpu_custom_call.1} parent=5 // pred_fallthru
        _
      %p171 = scmp.lt.s32.totalorder %s16, 4
      // Predicated region
      $region21: #{tpu_custom_call.1} parent=5 // pred_check
        %p172 = pneg %p171
      $region22: #{tpu_custom_call.1} parent=5 // pred_check_branch
        %174 = sbr.rel (%p172) target = $region24
      $region23: #{tpu_custom_call.1} parent=5 // pred_region
        // Predicated region
        $region25: #{tpu_custom_call.1} parent=23 // pred_check
          %p175 = pneg %p50
        $region26: #{tpu_custom_call.1} parent=23 // pred_check_branch
          %177 = sbr.rel (%p175) target = $region28
        $region27: #{tpu_custom_call.1} parent=23 // pred_region
          %s178 = sand.u32 %s40, 1
          %s179 = scalar_lea.sflag [#allocation3], %s178
          %s180 = sand.u32 %s40, 1
          %s181 = smul.addr %s180, 256
          %s182 = scalar_lea.vmem [#allocation2], %s181
          %s183 = smul.u32 32, %s23
          %s184 = smul.u32 2, %s24
          %s186 = ssub.s32 4096, 4096
          %187 = vsyncadd %s179, %s186
          %s188 = smul.addr %s183, 4
          %s189 = sadd.s32 %s184, %s188
          %s190 = smul.addr %s189, 64
          %s191 = scalar_lea.hbm %s0, %s190
          %s192 = sshll.u32 %s182, 4
          %s193 = int_to_ptr.vmem [resolvable:$true] %s192
          %198 = dma.hbm_to_vmem [thread:$0]  %s191, 4096, %s193, %s179, 256, 128, 8
        $region28: #{tpu_custom_call.1} parent=23 // pred_fallthru
          _
        // Predicated region
        $region29: #{tpu_custom_call.1} parent=23 // pred_check
          %p199 = pneg %p76
        $region30: #{tpu_custom_call.1} parent=23 // pred_check_branch
          %201 = sbr.rel (%p199) target = $region32
        $region31: #{tpu_custom_call.1} parent=23 // pred_region
          %s202 = smul.u32 32, %s24
          %p203 = scmp.lt.s32.totalorder %s202, 63
          %s204 = scalar_select %p203, %s202, 63
          %s205 = smul.addr %s204, 4
          %s206 = scalar_lea.vmem %s1, %s205
          %s207 = smul.u32 32, %s24
        $region32: #{tpu_custom_call.1} parent=23 // pred_fallthru
          _
      $region24: #{tpu_custom_call.1} parent=5 // pred_fallthru
        _
      %p208 = scmp.le.s32.totalorder 1, %s16
      %p209 = scmp.lt.s32.totalorder %s16, 5
      %p210 = pnand %p208, %p209
      %p211 = pneg %p210
      // Predicated region
      $region33: #{tpu_custom_call.1} parent=5 // pred_check
        _
      $region34: #{tpu_custom_call.1} parent=5 // pred_check_branch
        %213 = sbr.rel (%p210) target = $region36
      $region35: #{tpu_custom_call.1} parent=5 // pred_region
        %s214 = ssub.s32 %s16, 1
        %s215 = sand.u32 %s43, 1
        %s216 = scalar_lea.sflag [#allocation3], %s215
        %s217 = sand.u32 %s43, 1
        %s218 = smul.addr %s217, 256
        %s219 = scalar_lea.vmem [#allocation2], %s218
        // Predicated region
        $region37: #{tpu_custom_call.1} parent=35 // pred_check
          %p220 = pneg %p56
        $region38: #{tpu_custom_call.1} parent=35 // pred_check_branch
          %222 = sbr.rel (%p220) target = $region40
        $region39: #{tpu_custom_call.1} parent=35 // pred_region
          %223 = dma.done %s216, 4096
        $region40: #{tpu_custom_call.1} parent=35 // pred_fallthru
          _
        %s224 = sand.u32 %s43, 1
        %s225 = scalar_lea.sflag [#allocation3], %s224
        %s226 = sand.u32 %s43, 1
        %s227 = smul.addr %s226, 256
        %s228 = scalar_lea.vmem [#allocation2], %s227
        %p229 = pneg %p56
        %p230 = pneg %p53
        %s231 = smul.u32 32, %s26
        %p232 = scmp.lt.s32.totalorder %s231, 63
        %s233 = scalar_select %p232, %s231, 63
        %s234 = smul.addr %s233, 4
        %s235 = scalar_lea.vmem %s1, %s234
        %p236 = pneg %p82
        %p237 = pneg %p79
        %p238 = pneg %p103
        %p239 = pneg %p100
        %p240 = pneg %p124
        %p241 = pneg %p121
        %p242 = pneg %p150
        %p243 = pneg %p147
        %s244 = sand.u32 %s137, 1
        %s245 = scalar_lea.sflag [#allocation4], %s244
        %s246 = sand.u32 %s137, 1
        %s247 = smul.addr %s246, 256
        %s248 = scalar_lea.vmem [#allocation5], %s247
        %s249 = smul.u32 32, %s25
        %s250 = smul.u32 2, %s26
        %s251 = smul.u32 32, %s26
        %p252 = scmp.lt.s32.totalorder %s251, 63
        %s253 = scalar_select %p252, %s251, 63
        %s254 = smul.addr %s253, 4
        %s255 = scalar_lea.vmem %s1, %s254
        %s256 = smul.u32 32, %s26
        %s257 = smul.u32 32, %s25
        %p259 = scmp.eq.s32.totalorder %s26, 0
        // Predicated region
        $region41: #{tpu_custom_call.1} parent=35 // pred_check
          %p260 = pneg %p259
        $region42: #{tpu_custom_call.1} parent=35 // pred_check_branch
          %262 = sbr.rel (%p260) target = $region44
        $region43: #{tpu_custom_call.1} parent=35 // pred_region
          %263 = vst [vmem:[%s248] sm:$0xff] 0.0
          %264 = vst [vmem:[%s248 + $0x8] sm:$0xff] 0.0
          %265 = vst [vmem:[%s248 + $0x10] sm:$0xff] 0.0
          %266 = vst [vmem:[%s248 + $0x18] sm:$0xff] 0.0
          %267 = vst [vmem:[%s248 + $0x20] sm:$0xff] 0.0
          %268 = vst [vmem:[%s248 + $0x28] sm:$0xff] 0.0
          %269 = vst [vmem:[%s248 + $0x30] sm:$0xff] 0.0
          %270 = vst [vmem:[%s248 + $0x38] sm:$0xff] 0.0
          %271 = vst [vmem:[%s248 + $0x40] sm:$0xff] 0.0
          %272 = vst [vmem:[%s248 + $0x48] sm:$0xff] 0.0
          %273 = vst [vmem:[%s248 + $0x50] sm:$0xff] 0.0
          %274 = vst [vmem:[%s248 + $0x58] sm:$0xff] 0.0
          %275 = vst [vmem:[%s248 + $0x60] sm:$0xff] 0.0
          %276 = vst [vmem:[%s248 + $0x68] sm:$0xff] 0.0
          %277 = vst [vmem:[%s248 + $0x70] sm:$0xff] 0.0
          %278 = vst [vmem:[%s248 + $0x78] sm:$0xff] 0.0
          %279 = vst [vmem:[%s248 + $0x80] sm:$0xff] 0.0
          %280 = vst [vmem:[%s248 + $0x88] sm:$0xff] 0.0
          %281 = vst [vmem:[%s248 + $0x90] sm:$0xff] 0.0
          %282 = vst [vmem:[%s248 + $0x98] sm:$0xff] 0.0
          %283 = vst [vmem:[%s248 + $0xa0] sm:$0xff] 0.0
          %284 = vst [vmem:[%s248 + $0xa8] sm:$0xff] 0.0
          %285 = vst [vmem:[%s248 + $0xb0] sm:$0xff] 0.0
          %286 = vst [vmem:[%s248 + $0xb8] sm:$0xff] 0.0
          %287 = vst [vmem:[%s248 + $0xc0] sm:$0xff] 0.0
          %288 = vst [vmem:[%s248 + $0xc8] sm:$0xff] 0.0
          %289 = vst [vmem:[%s248 + $0xd0] sm:$0xff] 0.0
          %290 = vst [vmem:[%s248 + $0xd8] sm:$0xff] 0.0
          %291 = vst [vmem:[%s248 + $0xe0] sm:$0xff] 0.0
          %292 = vst [vmem:[%s248 + $0xe8] sm:$0xff] 0.0
          %293 = vst [vmem:[%s248 + $0xf0] sm:$0xff] 0.0
          %294 = vst [vmem:[%s248 + $0xf8] sm:$0xff] 0.0
        $region44: #{tpu_custom_call.1} parent=35 // pred_fallthru
          _
        %v295 = vld [vmem:[%s255] sm:$0xf]
        %v296 = vld [vmem:[%s255 + $0x4] sm:$0xf]
        %v297 = vld [vmem:[%s255 + $0x8] sm:$0xf]
        %v298 = vld [vmem:[%s255 + $0xc] sm:$0xf]
        %v299 = vld [vmem:[%s255 + $0x10] sm:$0xf]
        %v300 = vld [vmem:[%s255 + $0x14] sm:$0xf]
        %v301 = vld [vmem:[%s255 + $0x18] sm:$0xf]
        %v302 = vld [vmem:[%s255 + $0x1c] sm:$0xf]
        %v303 = vld [vmem:[%s255 + $0x20] sm:$0xf]
        %v304 = vld [vmem:[%s255 + $0x24] sm:$0xf]
        %v305 = vld [vmem:[%s255 + $0x28] sm:$0xf]
        %v306 = vld [vmem:[%s255 + $0x2c] sm:$0xf]
        %v307 = vld [vmem:[%s255 + $0x30] sm:$0xf]
        %v308 = vld [vmem:[%s255 + $0x34] sm:$0xf]
        %v309 = vld [vmem:[%s255 + $0x38] sm:$0xf]
        %v310 = vld [vmem:[%s255 + $0x3c] sm:$0xf]
        %v311 = vld [vmem:[%s255 + $0x40] sm:$0xf]
        %v312 = vld [vmem:[%s255 + $0x44] sm:$0xf]
        %v313 = vld [vmem:[%s255 + $0x48] sm:$0xf]
        %v314 = vld [vmem:[%s255 + $0x4c] sm:$0xf]
        %v315 = vld [vmem:[%s255 + $0x50] sm:$0xf]
        %v316 = vld [vmem:[%s255 + $0x54] sm:$0xf]
        %v317 = vld [vmem:[%s255 + $0x58] sm:$0xf]
        %v318 = vld [vmem:[%s255 + $0x5c] sm:$0xf]
        %v319 = vld [vmem:[%s255 + $0x60] sm:$0xf]
        %v320 = vld [vmem:[%s255 + $0x64] sm:$0xf]
        %v321 = vld [vmem:[%s255 + $0x68] sm:$0xf]
        %v322 = vld [vmem:[%s255 + $0x6c] sm:$0xf]
        %v323 = vld [vmem:[%s255 + $0x70] sm:$0xf]
        %v324 = vld [vmem:[%s255 + $0x74] sm:$0xf]
        %v325 = vld [vmem:[%s255 + $0x78] sm:$0xf]
        %v326 = vld [vmem:[%s255 + $0x7c] sm:$0xf]
        %v327 = vld [vmem:[%s2] sm:$0xf]
        %v328 = vld [vmem:[%s2 + $0x4] sm:$0xf]
        %v329 = vld [vmem:[%s2 + $0x8] sm:$0xf]
        %v330 = vld [vmem:[%s2 + $0xc] sm:$0xf]
        %v363 = vunpack.c.l.b16 %v295
        %v364 = vunpack.c.l.b16 %v296
        %v365 = vunpack.c.l.b16 %v297
        %v366 = vunpack.c.l.b16 %v298
        %v367 = vunpack.c.l.b16 %v299
        %v368 = vunpack.c.l.b16 %v300
        %v369 = vunpack.c.l.b16 %v301
        %v370 = vunpack.c.l.b16 %v302
        %v371 = vunpack.c.l.b16 %v303
        %v372 = vunpack.c.l.b16 %v304
        %v373 = vunpack.c.l.b16 %v305
        %v374 = vunpack.c.l.b16 %v306
        %v375 = vunpack.c.l.b16 %v307
        %v376 = vunpack.c.l.b16 %v308
        %v377 = vunpack.c.l.b16 %v309
        %v378 = vunpack.c.l.b16 %v310
        %v379 = vunpack.c.l.b16 %v311
        %v380 = vunpack.c.l.b16 %v312
        %v381 = vunpack.c.l.b16 %v313
        %v382 = vunpack.c.l.b16 %v314
        %v383 = vunpack.c.l.b16 %v315
        %v384 = vunpack.c.l.b16 %v316
        %v385 = vunpack.c.l.b16 %v317
        %v386 = vunpack.c.l.b16 %v318
        %v387 = vunpack.c.l.b16 %v319
        %v388 = vunpack.c.l.b16 %v320
        %v389 = vunpack.c.l.b16 %v321
        %v390 = vunpack.c.l.b16 %v322
        %v391 = vunpack.c.l.b16 %v323
        %v392 = vunpack.c.l.b16 %v324
        %v393 = vunpack.c.l.b16 %v325
        %v394 = vunpack.c.l.b16 %v326
        %v395 = vpack.c.b16 %v364, %v363
        %v396 = vpack.c.b16 %v366, %v365
        %v397 = vpack.c.b16 %v368, %v367
        %v398 = vpack.c.b16 %v370, %v369
        %v399 = vpack.c.b16 %v372, %v371
        %v400 = vpack.c.b16 %v374, %v373
        %v401 = vpack.c.b16 %v376, %v375
        %v402 = vpack.c.b16 %v378, %v377
        %v403 = vpack.c.b16 %v380, %v379
        %v404 = vpack.c.b16 %v382, %v381
        %v405 = vpack.c.b16 %v384, %v383
        %v406 = vpack.c.b16 %v386, %v385
        %v407 = vpack.c.b16 %v388, %v387
        %v408 = vpack.c.b16 %v390, %v389
        %v409 = vpack.c.b16 %v392, %v391
        %v410 = vpack.c.b16 %v394, %v393
        %v415 = vunpack.c.l.b16 %v327
        %v416 = vunpack.c.l.b16 %v328
        %v417 = vunpack.c.l.b16 %v329
        %v418 = vunpack.c.l.b16 %v330
        %v419 = vpack.c.b16 %v416, %v415
        %v420 = vpack.c.b16 %v418, %v417
        %vm423 = vcmask 261120
        %v425 = vsel %vm423, %v395, 0
        %v428 = vsel %vm423, %v396, 0
        %v431 = vsel %vm423, %v397, 0
        %v434 = vsel %vm423, %v398, 0
        %v437 = vsel %vm423, %v399, 0
        %v440 = vsel %vm423, %v400, 0
        %v443 = vsel %vm423, %v401, 0
        %v446 = vsel %vm423, %v402, 0
        %v449 = vsel %vm423, %v403, 0
        %v452 = vsel %vm423, %v404, 0
        %v455 = vsel %vm423, %v405, 0
        %v458 = vsel %vm423, %v406, 0
        %v461 = vsel %vm423, %v407, 0
        %v464 = vsel %vm423, %v408, 0
        %v467 = vsel %vm423, %v409, 0
        %v470 = vsel %vm423, %v410, 0
        %472 = vmatprep.subr.bf16.mxu0 0
        %473 = vmatpush1.bf16.msra.mxu0 %v419
        %474 = vmatprep.subr.bf16.mxu0 0
        %475 = vmatpush1.bf16.msra.mxu0 %v420
        %476 = vmatprep.subr.bf16.mxu0 0
        %477 = vmatpush1.bf16.msra.mxu0 0
        %478 = vmatprep.subr.bf16.mxu0 0
        %479 = vmatpush1.bf16.msra.mxu0 0
        %480 = vmatprep.subr.bf16.mxu0 0
        %481 = vmatpush1.bf16.msra.mxu0 0
        %482 = vmatprep.subr.bf16.mxu0 0
        %483 = vmatpush1.bf16.msra.mxu0 0
        %484 = vmatprep.subr.bf16.mxu0 0
        %485 = vmatpush1.bf16.msra.mxu0 0
        %486 = vmatprep.subr.bf16.mxu0 0
        %487 = vmatpush1.bf16.msra.mxu0 0
        %488 = vmatprep.subr.bf16.mxu0 0
        %489 = vmatpush1.bf16.msra.mxu0 0
        %490 = vmatprep.subr.bf16.mxu0 0
        %491 = vmatpush1.bf16.msra.mxu0 0
        %492 = vmatprep.subr.bf16.mxu0 0
        %493 = vmatpush1.bf16.msra.mxu0 0
        %494 = vmatprep.subr.bf16.mxu0 0
        %495 = vmatpush1.bf16.msra.mxu0 0
        %496 = vmatprep.subr.bf16.mxu0 0
        %497 = vmatpush1.bf16.msra.mxu0 0
        %498 = vmatprep.subr.bf16.mxu0 0
        %499 = vmatpush1.bf16.msra.mxu0 0
        %500 = vmatprep.subr.bf16.mxu0 0
        %501 = vmatpush1.bf16.msra.mxu0 0
        %502 = vmatprep.subr.bf16.mxu0 0
        %503 = vmatpush1.bf16.msra.mxu0 0
        %504 = vmatprep.mubr.bf16.mxu0 0
        %505 = vmatmul.mubr.bf16.gmra.mrb[0].mxu0 %v425
        %v506 = vpop.f32.mrb[0].mxu0
        %v507 = vadd.f32 0.0, %v506
        %v508 = vpop.f32.mrb[0].mxu0
        %v509 = vpop.f32.mrb[0].mxu0
        %v510 = vadd.f32 0.0, %v509
        %v511 = vpop.f32.mrb[0].mxu0
        %512 = vmatprep.mubr.bf16.mxu0 0
        %513 = vmatmul.mubr.bf16.gmra.mrb[0].mxu0 %v428
        %v514 = vpop.f32.mrb[0].mxu0
        %v515 = vadd.f32 0.0, %v514
        %v516 = vpop.f32.mrb[0].mxu0
        %v517 = vpop.f32.mrb[0].mxu0
        %v518 = vadd.f32 0.0, %v517
        %v519 = vpop.f32.mrb[0].mxu0
        %520 = vmatprep.mubr.bf16.mxu0 0
        %521 = vmatmul.mubr.bf16.gmra.mrb[0].mxu0 %v431
        %v522 = vpop.f32.mrb[0].mxu0
        %v523 = vadd.f32 0.0, %v522
        %v524 = vpop.f32.mrb[0].mxu0
        %v525 = vpop.f32.mrb[0].mxu0
        %v526 = vadd.f32 0.0, %v525
        %v527 = vpop.f32.mrb[0].mxu0
        %528 = vmatprep.mubr.bf16.mxu0 0
        %529 = vmatmul.mubr.bf16.gmra.mrb[0].mxu0 %v434
        %v530 = vpop.f32.mrb[0].mxu0
        %v531 = vadd.f32 0.0, %v530
        %v532 = vpop.f32.mrb[0].mxu0
        %v533 = vpop.f32.mrb[0].mxu0
        %v534 = vadd.f32 0.0, %v533
        %v535 = vpop.f32.mrb[0].mxu0
        %536 = vmatprep.mubr.bf16.mxu0 0
        %537 = vmatmul.mubr.bf16.gmra.mrb[0].mxu0 %v437
        %v538 = vpop.f32.mrb[0].mxu0
        %v539 = vadd.f32 0.0, %v538
        %v540 = vpop.f32.mrb[0].mxu0
        %v541 = vpop.f32.mrb[0].mxu0
        %v542 = vadd.f32 0.0, %v541
        %v543 = vpop.f32.mrb[0].mxu0
        %544 = vmatprep.mubr.bf16.mxu0 0
        %545 = vmatmul.mubr.bf16.gmra.mrb[0].mxu0 %v440
        %v546 = vpop.f32.mrb[0].mxu0
        %v547 = vadd.f32 0.0, %v546
        %v548 = vpop.f32.mrb[0].mxu0
        %v549 = vpop.f32.mrb[0].mxu0
        %v550 = vadd.f32 0.0, %v549
        %v551 = vpop.f32.mrb[0].mxu0
        %552 = vmatprep.mubr.bf16.mxu0 0
        %553 = vmatmul.mubr.bf16.gmra.mrb[0].mxu0 %v443
        %v554 = vpop.f32.mrb[0].mxu0
        %v555 = vadd.f32 0.0, %v554
        %v556 = vpop.f32.mrb[0].mxu0
        %v557 = vpop.f32.mrb[0].mxu0
        %v558 = vadd.f32 0.0, %v557
        %v559 = vpop.f32.mrb[0].mxu0
        %560 = vmatprep.mubr.bf16.mxu0 0
        %561 = vmatmul.mubr.bf16.gmra.mrb[0].mxu0 %v446
        %v562 = vpop.f32.mrb[0].mxu0
        %v563 = vadd.f32 0.0, %v562
        %v564 = vpop.f32.mrb[0].mxu0
        %v565 = vpop.f32.mrb[0].mxu0
        %v566 = vadd.f32 0.0, %v565
        %v567 = vpop.f32.mrb[0].mxu0
        %568 = vmatprep.mubr.bf16.mxu0 0
        %569 = vmatmul.mubr.bf16.gmra.mrb[0].mxu0 %v449
        %v570 = vpop.f32.mrb[0].mxu0
        %v571 = vadd.f32 0.0, %v570
        %v572 = vpop.f32.mrb[0].mxu0
        %v573 = vpop.f32.mrb[0].mxu0
        %v574 = vadd.f32 0.0, %v573
        %v575 = vpop.f32.mrb[0].mxu0
        %576 = vmatprep.mubr.bf16.mxu0 0
        %577 = vmatmul.mubr.bf16.gmra.mrb[0].mxu0 %v452
        %v578 = vpop.f32.mrb[0].mxu0
        %v579 = vadd.f32 0.0, %v578
        %v580 = vpop.f32.mrb[0].mxu0
        %v581 = vpop.f32.mrb[0].mxu0
        %v582 = vadd.f32 0.0, %v581
        %v583 = vpop.f32.mrb[0].mxu0
        %584 = vmatprep.mubr.bf16.mxu0 0
        %585 = vmatmul.mubr.bf16.gmra.mrb[0].mxu0 %v455
        %v586 = vpop.f32.mrb[0].mxu0
        %v587 = vadd.f32 0.0, %v586
        %v588 = vpop.f32.mrb[0].mxu0
        %v589 = vpop.f32.mrb[0].mxu0
        %v590 = vadd.f32 0.0, %v589
        %v591 = vpop.f32.mrb[0].mxu0
        %592 = vmatprep.mubr.bf16.mxu0 0
        %593 = vmatmul.mubr.bf16.gmra.mrb[0].mxu0 %v458
        %v594 = vpop.f32.mrb[0].mxu0
        %v595 = vadd.f32 0.0, %v594
        %v596 = vpop.f32.mrb[0].mxu0
        %v597 = vpop.f32.mrb[0].mxu0
        %v598 = vadd.f32 0.0, %v597
        %v599 = vpop.f32.mrb[0].mxu0
        %600 = vmatprep.mubr.bf16.mxu0 0
        %601 = vmatmul.mubr.bf16.gmra.mrb[0].mxu0 %v461
        %v602 = vpop.f32.mrb[0].mxu0
        %v603 = vadd.f32 0.0, %v602
        %v604 = vpop.f32.mrb[0].mxu0
        %v605 = vpop.f32.mrb[0].mxu0
        %v606 = vadd.f32 0.0, %v605
        %v607 = vpop.f32.mrb[0].mxu0
        %608 = vmatprep.mubr.bf16.mxu0 0
        %609 = vmatmul.mubr.bf16.gmra.mrb[0].mxu0 %v464
        %v610 = vpop.f32.mrb[0].mxu0
        %v611 = vadd.f32 0.0, %v610
        %v612 = vpop.f32.mrb[0].mxu0
        %v613 = vpop.f32.mrb[0].mxu0
        %v614 = vadd.f32 0.0, %v613
        %v615 = vpop.f32.mrb[0].mxu0
        %616 = vmatprep.mubr.bf16.mxu0 0
        %617 = vmatmul.mubr.bf16.gmra.mrb[0].mxu0 %v467
        %v618 = vpop.f32.mrb[0].mxu0
        %v619 = vadd.f32 0.0, %v618
        %v620 = vpop.f32.mrb[0].mxu0
        %v621 = vpop.f32.mrb[0].mxu0
        %v622 = vadd.f32 0.0, %v621
        %v623 = vpop.f32.mrb[0].mxu0
        %624 = vmatprep.mubr.bf16.mxu0 0
        %625 = vmatmul.mubr.bf16.gmra.mrb[0].mxu0 %v470
        %v626 = vpop.f32.mrb[0].mxu0
        %v627 = vadd.f32 0.0, %v626
        %v628 = vpop.f32.mrb[0].mxu0
        %v629 = vpop.f32.mrb[0].mxu0
        %v630 = vadd.f32 0.0, %v629
        %v631 = vpop.f32.mrb[0].mxu0
        %632 = vdwg.mxu0
        %v633 = vpack.c.bf16 %v510, %v507
        %v634 = vpack.c.bf16 %v518, %v515
        %v635 = vpack.c.bf16 %v526, %v523
        %v636 = vpack.c.bf16 %v534, %v531
        %v637 = vpack.c.bf16 %v542, %v539
        %v638 = vpack.c.bf16 %v550, %v547
        %v639 = vpack.c.bf16 %v558, %v555
        %v640 = vpack.c.bf16 %v566, %v563
        %v641 = vpack.c.bf16 %v574, %v571
        %v642 = vpack.c.bf16 %v582, %v579
        %v643 = vpack.c.bf16 %v590, %v587
        %v644 = vpack.c.bf16 %v598, %v595
        %v645 = vpack.c.bf16 %v606, %v603
        %v646 = vpack.c.bf16 %v614, %v611
        %v647 = vpack.c.bf16 %v622, %v619
        %v648 = vpack.c.bf16 %v630, %v627
        %v649 = vld [vmem:[%s248] sm:$0xff]
        %v650 = vld [vmem:[%s248 + $0x8] sm:$0xff]
        %v651 = vld [vmem:[%s248 + $0x10] sm:$0xff]
        %v652 = vld [vmem:[%s248 + $0x18] sm:$0xff]
        %v653 = vld [vmem:[%s248 + $0x20] sm:$0xff]
        %v654 = vld [vmem:[%s248 + $0x28] sm:$0xff]
        %v655 = vld [vmem:[%s248 + $0x30] sm:$0xff]
        %v656 = vld [vmem:[%s248 + $0x38] sm:$0xff]
        %v657 = vld [vmem:[%s248 + $0x40] sm:$0xff]
        %v658 = vld [vmem:[%s248 + $0x48] sm:$0xff]
        %v659 = vld [vmem:[%s248 + $0x50] sm:$0xff]
        %v660 = vld [vmem:[%s248 + $0x58] sm:$0xff]
        %v661 = vld [vmem:[%s248 + $0x60] sm:$0xff]
        %v662 = vld [vmem:[%s248 + $0x68] sm:$0xff]
        %v663 = vld [vmem:[%s248 + $0x70] sm:$0xff]
        %v664 = vld [vmem:[%s248 + $0x78] sm:$0xff]
        %v665 = vld [vmem:[%s248 + $0x80] sm:$0xff]
        %v666 = vld [vmem:[%s248 + $0x88] sm:$0xff]
        %v667 = vld [vmem:[%s248 + $0x90] sm:$0xff]
        %v668 = vld [vmem:[%s248 + $0x98] sm:$0xff]
        %v669 = vld [vmem:[%s248 + $0xa0] sm:$0xff]
        %v670 = vld [vmem:[%s248 + $0xa8] sm:$0xff]
        %v671 = vld [vmem:[%s248 + $0xb0] sm:$0xff]
        %v672 = vld [vmem:[%s248 + $0xb8] sm:$0xff]
        %v673 = vld [vmem:[%s248 + $0xc0] sm:$0xff]
        %v674 = vld [vmem:[%s248 + $0xc8] sm:$0xff]
        %v675 = vld [vmem:[%s248 + $0xd0] sm:$0xff]
        %v676 = vld [vmem:[%s248 + $0xd8] sm:$0xff]
        %v677 = vld [vmem:[%s248 + $0xe0] sm:$0xff]
        %v678 = vld [vmem:[%s248 + $0xe8] sm:$0xff]
        %v679 = vld [vmem:[%s248 + $0xf0] sm:$0xff]
        %v680 = vld [vmem:[%s248 + $0xf8] sm:$0xff]
        %v681 = vld [vmem:[%s219] sm:$0xff]
        %v682 = vld [vmem:[%s219 + $0x8] sm:$0xff]
        %v683 = vld [vmem:[%s219 + $0x10] sm:$0xff]
        %v684 = vld [vmem:[%s219 + $0x18] sm:$0xff]
        %v685 = vld [vmem:[%s219 + $0x20] sm:$0xff]
        %v686 = vld [vmem:[%s219 + $0x28] sm:$0xff]
        %v687 = vld [vmem:[%s219 + $0x30] sm:$0xff]
        %v688 = vld [vmem:[%s219 + $0x38] sm:$0xff]
        %v689 = vld [vmem:[%s219 + $0x40] sm:$0xff]
        %v690 = vld [vmem:[%s219 + $0x48] sm:$0xff]
        %v691 = vld [vmem:[%s219 + $0x50] sm:$0xff]
        %v692 = vld [vmem:[%s219 + $0x58] sm:$0xff]
        %v693 = vld [vmem:[%s219 + $0x60] sm:$0xff]
        %v694 = vld [vmem:[%s219 + $0x68] sm:$0xff]
        %v695 = vld [vmem:[%s219 + $0x70] sm:$0xff]
        %v696 = vld [vmem:[%s219 + $0x78] sm:$0xff]
        %v697 = vld [vmem:[%s219 + $0x80] sm:$0xff]
        %v698 = vld [vmem:[%s219 + $0x88] sm:$0xff]
        %v699 = vld [vmem:[%s219 + $0x90] sm:$0xff]
        %v700 = vld [vmem:[%s219 + $0x98] sm:$0xff]
        %v701 = vld [vmem:[%s219 + $0xa0] sm:$0xff]
        %v702 = vld [vmem:[%s219 + $0xa8] sm:$0xff]
        %v703 = vld [vmem:[%s219 + $0xb0] sm:$0xff]
        %v704 = vld [vmem:[%s219 + $0xb8] sm:$0xff]
        %v705 = vld [vmem:[%s219 + $0xc0] sm:$0xff]
        %v706 = vld [vmem:[%s219 + $0xc8] sm:$0xff]
        %v707 = vld [vmem:[%s219 + $0xd0] sm:$0xff]
        %v708 = vld [vmem:[%s219 + $0xd8] sm:$0xff]
        %v709 = vld [vmem:[%s219 + $0xe0] sm:$0xff]
        %v710 = vld [vmem:[%s219 + $0xe8] sm:$0xff]
        %v711 = vld [vmem:[%s219 + $0xf0] sm:$0xff]
        %v712 = vld [vmem:[%s219 + $0xf8] sm:$0xff]
        %v745 = vunpack.c.l.b16 %v681
        %v746 = vunpack.c.h.b16 %v681
        %v747 = vunpack.c.l.b16 %v682
        %v748 = vunpack.c.h.b16 %v682
        %v749 = vunpack.c.l.b16 %v683
        %v750 = vunpack.c.h.b16 %v683
        %v751 = vunpack.c.l.b16 %v684
        %v752 = vunpack.c.h.b16 %v684
        %v753 = vunpack.c.l.b16 %v685
        %v754 = vunpack.c.h.b16 %v685
        %v755 = vunpack.c.l.b16 %v686
        %v756 = vunpack.c.h.b16 %v686
        %v757 = vunpack.c.l.b16 %v687
        %v758 = vunpack.c.h.b16 %v687
        %v759 = vunpack.c.l.b16 %v688
        %v760 = vunpack.c.h.b16 %v688
        %v761 = vunpack.c.l.b16 %v689
        %v762 = vunpack.c.h.b16 %v689
        %v763 = vunpack.c.l.b16 %v690
        %v764 = vunpack.c.h.b16 %v690
        %v765 = vunpack.c.l.b16 %v691
        %v766 = vunpack.c.h.b16 %v691
        %v767 = vunpack.c.l.b16 %v692
        %v768 = vunpack.c.h.b16 %v692
        %v769 = vunpack.c.l.b16 %v693
        %v770 = vunpack.c.h.b16 %v693
        %v771 = vunpack.c.l.b16 %v694
        %v772 = vunpack.c.h.b16 %v694
        %v773 = vunpack.c.l.b16 %v695
        %v774 = vunpack.c.h.b16 %v695
        %v775 = vunpack.c.l.b16 %v696
        %v776 = vunpack.c.h.b16 %v696
        %v777 = vunpack.c.l.b16 %v697
        %v778 = vunpack.c.h.b16 %v697
        %v779 = vunpack.c.l.b16 %v698
        %v780 = vunpack.c.h.b16 %v698
        %v781 = vunpack.c.l.b16 %v699
        %v782 = vunpack.c.h.b16 %v699
        %v783 = vunpack.c.l.b16 %v700
        %v784 = vunpack.c.h.b16 %v700
        %v785 = vunpack.c.l.b16 %v701
        %v786 = vunpack.c.h.b16 %v701
        %v787 = vunpack.c.l.b16 %v702
        %v788 = vunpack.c.h.b16 %v702
        %v789 = vunpack.c.l.b16 %v703
        %v790 = vunpack.c.h.b16 %v703
        %v791 = vunpack.c.l.b16 %v704
        %v792 = vunpack.c.h.b16 %v704
        %v793 = vunpack.c.l.b16 %v705
        %v794 = vunpack.c.h.b16 %v705
        %v795 = vunpack.c.l.b16 %v706
        %v796 = vunpack.c.h.b16 %v706
        %v797 = vunpack.c.l.b16 %v707
        %v798 = vunpack.c.h.b16 %v707
        %v799 = vunpack.c.l.b16 %v708
        %v800 = vunpack.c.h.b16 %v708
        %v801 = vunpack.c.l.b16 %v709
        %v802 = vunpack.c.h.b16 %v709
        %v803 = vunpack.c.l.b16 %v710
        %v804 = vunpack.c.h.b16 %v710
        %v805 = vunpack.c.l.b16 %v711
        %v806 = vunpack.c.h.b16 %v711
        %v807 = vunpack.c.l.b16 %v712
        %v808 = vunpack.c.h.b16 %v712
        %v809 = vpack.c.b16 %v747, %v745
        %v810 = vpack.c.b16 %v748, %v746
        %v811 = vpack.c.b16 %v751, %v749
        %v812 = vpack.c.b16 %v752, %v750
        %v813 = vpack.c.b16 %v755, %v753
        %v814 = vpack.c.b16 %v756, %v754
        %v815 = vpack.c.b16 %v759, %v757
        %v816 = vpack.c.b16 %v760, %v758
        %v817 = vpack.c.b16 %v763, %v761
        %v818 = vpack.c.b16 %v764, %v762
        %v819 = vpack.c.b16 %v767, %v765
        %v820 = vpack.c.b16 %v768, %v766
        %v821 = vpack.c.b16 %v771, %v769
        %v822 = vpack.c.b16 %v772, %v770
        %v823 = vpack.c.b16 %v775, %v773
        %v824 = vpack.c.b16 %v776, %v774
        %v825 = vpack.c.b16 %v779, %v777
        %v826 = vpack.c.b16 %v780, %v778
        %v827 = vpack.c.b16 %v783, %v781
        %v828 = vpack.c.b16 %v784, %v782
        %v829 = vpack.c.b16 %v787, %v785
        %v830 = vpack.c.b16 %v788, %v786
        %v831 = vpack.c.b16 %v791, %v789
        %v832 = vpack.c.b16 %v792, %v790
        %v833 = vpack.c.b16 %v795, %v793
        %v834 = vpack.c.b16 %v796, %v794
        %v835 = vpack.c.b16 %v799, %v797
        %v836 = vpack.c.b16 %v800, %v798
        %v837 = vpack.c.b16 %v803, %v801
        %v838 = vpack.c.b16 %v804, %v802
        %v839 = vpack.c.b16 %v807, %v805
        %v840 = vpack.c.b16 %v808, %v806
        %873 = vmatprep.subr.bf16.mxu0 0
        %874 = vmatpush1.bf16.msra.mxu0 %v633
        %875 = vmatprep.subr.bf16.mxu0 0
        %876 = vmatpush1.bf16.msra.mxu0 %v634
        %877 = vmatprep.subr.bf16.mxu0 0
        %878 = vmatpush1.bf16.msra.mxu0 %v635
        %879 = vmatprep.subr.bf16.mxu0 0
        %880 = vmatpush1.bf16.msra.mxu0 %v636
        %881 = vmatprep.subr.bf16.mxu0 0
        %882 = vmatpush1.bf16.msra.mxu0 %v637
        %883 = vmatprep.subr.bf16.mxu0 0
        %884 = vmatpush1.bf16.msra.mxu0 %v638
        %885 = vmatprep.subr.bf16.mxu0 0
        %886 = vmatpush1.bf16.msra.mxu0 %v639
        %887 = vmatprep.subr.bf16.mxu0 0
        %888 = vmatpush1.bf16.msra.mxu0 %v640
        %889 = vmatprep.subr.bf16.mxu0 0
        %890 = vmatpush1.bf16.msra.mxu0 %v641
        %891 = vmatprep.subr.bf16.mxu0 0
        %892 = vmatpush1.bf16.msra.mxu0 %v642
        %893 = vmatprep.subr.bf16.mxu0 0
        %894 = vmatpush1.bf16.msra.mxu0 %v643
        %895 = vmatprep.subr.bf16.mxu0 0
        %896 = vmatpush1.bf16.msra.mxu0 %v644
        %897 = vmatprep.subr.bf16.mxu0 0
        %898 = vmatpush1.bf16.msra.mxu0 %v645
        %899 = vmatprep.subr.bf16.mxu0 0
        %900 = vmatpush1.bf16.msra.mxu0 %v646
        %901 = vmatprep.subr.bf16.mxu0 0
        %902 = vmatpush1.bf16.msra.mxu0 %v647
        %903 = vmatprep.subr.bf16.mxu0 0
        %904 = vmatpush1.bf16.msra.mxu0 %v648
        %905 = vmatprep.mubr.bf16.mxu0 %v810
        %906 = vmatmul.mubr.bf16.gmra.mrb[0].mxu0 %v809
        %v907 = vpop.f32.mrb[0].mxu0
        %v908 = vadd.f32 0.0, %v907
        %v909 = vpop.f32.mrb[0].mxu0
        %v910 = vpop.f32.mrb[0].mxu0
        %v911 = vadd.f32 0.0, %v910
        %v912 = vpop.f32.mrb[0].mxu0
        %913 = vmatprep.mubr.bf16.mxu0 %v812
        %914 = vmatmul.mubr.bf16.gmra.mrb[0].mxu0 %v811
        %v915 = vpop.f32.mrb[0].mxu0
        %v916 = vadd.f32 0.0, %v915
        %v917 = vpop.f32.mrb[0].mxu0
        %v918 = vpop.f32.mrb[0].mxu0
        %v919 = vadd.f32 0.0, %v918
        %v920 = vpop.f32.mrb[0].mxu0
        %921 = vmatprep.mubr.bf16.mxu0 %v814
        %922 = vmatmul.mubr.bf16.gmra.mrb[0].mxu0 %v813
        %v923 = vpop.f32.mrb[0].mxu0
        %v924 = vadd.f32 0.0, %v923
        %v925 = vpop.f32.mrb[0].mxu0
        %v926 = vpop.f32.mrb[0].mxu0
        %v927 = vadd.f32 0.0, %v926
        %v928 = vpop.f32.mrb[0].mxu0
        %929 = vmatprep.mubr.bf16.mxu0 %v816
        %930 = vmatmul.mubr.bf16.gmra.mrb[0].mxu0 %v815
        %v931 = vpop.f32.mrb[0].mxu0
        %v932 = vadd.f32 0.0, %v931
        %v933 = vpop.f32.mrb[0].mxu0
        %v934 = vpop.f32.mrb[0].mxu0
        %v935 = vadd.f32 0.0, %v934
        %v936 = vpop.f32.mrb[0].mxu0
        %937 = vmatprep.mubr.bf16.mxu0 %v818
        %938 = vmatmul.mubr.bf16.gmra.mrb[0].mxu0 %v817
        %v939 = vpop.f32.mrb[0].mxu0
        %v940 = vadd.f32 0.0, %v939
        %v941 = vpop.f32.mrb[0].mxu0
        %v942 = vpop.f32.mrb[0].mxu0
        %v943 = vadd.f32 0.0, %v942
        %v944 = vpop.f32.mrb[0].mxu0
        %945 = vmatprep.mubr.bf16.mxu0 %v820
        %946 = vmatmul.mubr.bf16.gmra.mrb[0].mxu0 %v819
        %v947 = vpop.f32.mrb[0].mxu0
        %v948 = vadd.f32 0.0, %v947
        %v949 = vpop.f32.mrb[0].mxu0
        %v950 = vpop.f32.mrb[0].mxu0
        %v951 = vadd.f32 0.0, %v950
        %v952 = vpop.f32.mrb[0].mxu0
        %953 = vmatprep.mubr.bf16.mxu0 %v822
        %954 = vmatmul.mubr.bf16.gmra.mrb[0].mxu0 %v821
        %v955 = vpop.f32.mrb[0].mxu0
        %v956 = vadd.f32 0.0, %v955
        %v957 = vpop.f32.mrb[0].mxu0
        %v958 = vpop.f32.mrb[0].mxu0
        %v959 = vadd.f32 0.0, %v958
        %v960 = vpop.f32.mrb[0].mxu0
        %961 = vmatprep.mubr.bf16.mxu0 %v824
        %962 = vmatmul.mubr.bf16.gmra.mrb[0].mxu0 %v823
        %v963 = vpop.f32.mrb[0].mxu0
        %v964 = vadd.f32 0.0, %v963
        %v965 = vpop.f32.mrb[0].mxu0
        %v966 = vpop.f32.mrb[0].mxu0
        %v967 = vadd.f32 0.0, %v966
        %v968 = vpop.f32.mrb[0].mxu0
        %969 = vmatprep.mubr.bf16.mxu0 %v826
        %970 = vmatmul.mubr.bf16.gmra.mrb[0].mxu0 %v825
        %v971 = vpop.f32.mrb[0].mxu0
        %v972 = vadd.f32 0.0, %v971
        %v973 = vpop.f32.mrb[0].mxu0
        %v974 = vpop.f32.mrb[0].mxu0
        %v975 = vadd.f32 0.0, %v974
        %v976 = vpop.f32.mrb[0].mxu0
        %977 = vmatprep.mubr.bf16.mxu0 %v828
        %978 = vmatmul.mubr.bf16.gmra.mrb[0].mxu0 %v827
        %v979 = vpop.f32.mrb[0].mxu0
        %v980 = vadd.f32 0.0, %v979
        %v981 = vpop.f32.mrb[0].mxu0
        %v982 = vpop.f32.mrb[0].mxu0
        %v983 = vadd.f32 0.0, %v982
        %v984 = vpop.f32.mrb[0].mxu0
        %985 = vmatprep.mubr.bf16.mxu0 %v830
        %986 = vmatmul.mubr.bf16.gmra.mrb[0].mxu0 %v829
        %v987 = vpop.f32.mrb[0].mxu0
        %v988 = vadd.f32 0.0, %v987
        %v989 = vpop.f32.mrb[0].mxu0
        %v990 = vpop.f32.mrb[0].mxu0
        %v991 = vadd.f32 0.0, %v990
        %v992 = vpop.f32.mrb[0].mxu0
        %993 = vmatprep.mubr.bf16.mxu0 %v832
        %994 = vmatmul.mubr.bf16.gmra.mrb[0].mxu0 %v831
        %v995 = vpop.f32.mrb[0].mxu0
        %v996 = vadd.f32 0.0, %v995
        %v997 = vpop.f32.mrb[0].mxu0
        %v998 = vpop.f32.mrb[0].mxu0
        %v999 = vadd.f32 0.0, %v998
        %v1000 = vpop.f32.mrb[0].mxu0
        %1001 = vmatprep.mubr.bf16.mxu0 %v834
        %1002 = vmatmul.mubr.bf16.gmra.mrb[0].mxu0 %v833
        %v1003 = vpop.f32.mrb[0].mxu0
        %v1004 = vadd.f32 0.0, %v1003
        %v1005 = vpop.f32.mrb[0].mxu0
        %v1006 = vpop.f32.mrb[0].mxu0
        %v1007 = vadd.f32 0.0, %v1006
        %v1008 = vpop.f32.mrb[0].mxu0
        %1009 = vmatprep.mubr.bf16.mxu0 %v836
        %1010 = vmatmul.mubr.bf16.gmra.mrb[0].mxu0 %v835
        %v1011 = vpop.f32.mrb[0].mxu0
        %v1012 = vadd.f32 0.0, %v1011
        %v1013 = vpop.f32.mrb[0].mxu0
        %v1014 = vpop.f32.mrb[0].mxu0
        %v1015 = vadd.f32 0.0, %v1014
        %v1016 = vpop.f32.mrb[0].mxu0
        %1017 = vmatprep.mubr.bf16.mxu0 %v838
        %1018 = vmatmul.mubr.bf16.gmra.mrb[0].mxu0 %v837
        %v1019 = vpop.f32.mrb[0].mxu0
        %v1020 = vadd.f32 0.0, %v1019
        %v1021 = vpop.f32.mrb[0].mxu0
        %v1022 = vpop.f32.mrb[0].mxu0
        %v1023 = vadd.f32 0.0, %v1022
        %v1024 = vpop.f32.mrb[0].mxu0
        %1025 = vmatprep.mubr.bf16.mxu0 %v840
        %1026 = vmatmul.mubr.bf16.gmra.mrb[0].mxu0 %v839
        %v1027 = vpop.f32.mrb[0].mxu0
        %v1028 = vadd.f32 0.0, %v1027
        %v1029 = vpop.f32.mrb[0].mxu0
        %v1030 = vpop.f32.mrb[0].mxu0
        %v1031 = vadd.f32 0.0, %v1030
        %v1032 = vpop.f32.mrb[0].mxu0
        %1033 = vdwg.mxu0
        %v1034 = vadd.f32 %v649, %v908
        %v1035 = vadd.f32 %v650, %v911
        %v1036 = vadd.f32 %v651, %v916
        %v1037 = vadd.f32 %v652, %v919
        %v1038 = vadd.f32 %v653, %v924
        %v1039 = vadd.f32 %v654, %v927
        %v1040 = vadd.f32 %v655, %v932
        %v1041 = vadd.f32 %v656, %v935
        %v1042 = vadd.f32 %v657, %v940
        %v1043 = vadd.f32 %v658, %v943
        %v1044 = vadd.f32 %v659, %v948
        %v1045 = vadd.f32 %v660, %v951
        %v1046 = vadd.f32 %v661, %v956
        %v1047 = vadd.f32 %v662, %v959
        %v1048 = vadd.f32 %v663, %v964
        %v1049 = vadd.f32 %v664, %v967
        %v1050 = vadd.f32 %v665, %v972
        %v1051 = vadd.f32 %v666, %v975
        %v1052 = vadd.f32 %v667, %v980
        %v1053 = vadd.f32 %v668, %v983
        %v1054 = vadd.f32 %v669, %v988
        %v1055 = vadd.f32 %v670, %v991
        %v1056 = vadd.f32 %v671, %v996
        %v1057 = vadd.f32 %v672, %v999
        %v1058 = vadd.f32 %v673, %v1004
        %v1059 = vadd.f32 %v674, %v1007
        %v1060 = vadd.f32 %v675, %v1012
        %v1061 = vadd.f32 %v676, %v1015
        %v1062 = vadd.f32 %v677, %v1020
        %v1063 = vadd.f32 %v678, %v1023
        %v1064 = vadd.f32 %v679, %v1028
        %v1065 = vadd.f32 %v680, %v1031
        %1066 = vst [vmem:[%s248] sm:$0xff] %v1034
        %1067 = vst [vmem:[%s248 + $0x8] sm:$0xff] %v1035
        %1068 = vst [vmem:[%s248 + $0x10] sm:$0xff] %v1036
        %1069 = vst [vmem:[%s248 + $0x18] sm:$0xff] %v1037
        %1070 = vst [vmem:[%s248 + $0x20] sm:$0xff] %v1038
        %1071 = vst [vmem:[%s248 + $0x28] sm:$0xff] %v1039
        %1072 = vst [vmem:[%s248 + $0x30] sm:$0xff] %v1040
        %1073 = vst [vmem:[%s248 + $0x38] sm:$0xff] %v1041
        %1074 = vst [vmem:[%s248 + $0x40] sm:$0xff] %v1042
        %1075 = vst [vmem:[%s248 + $0x48] sm:$0xff] %v1043
        %1076 = vst [vmem:[%s248 + $0x50] sm:$0xff] %v1044
        %1077 = vst [vmem:[%s248 + $0x58] sm:$0xff] %v1045
        %1078 = vst [vmem:[%s248 + $0x60] sm:$0xff] %v1046
        %1079 = vst [vmem:[%s248 + $0x68] sm:$0xff] %v1047
        %1080 = vst [vmem:[%s248 + $0x70] sm:$0xff] %v1048
        %1081 = vst [vmem:[%s248 + $0x78] sm:$0xff] %v1049
        %1082 = vst [vmem:[%s248 + $0x80] sm:$0xff] %v1050
        %1083 = vst [vmem:[%s248 + $0x88] sm:$0xff] %v1051
        %1084 = vst [vmem:[%s248 + $0x90] sm:$0xff] %v1052
        %1085 = vst [vmem:[%s248 + $0x98] sm:$0xff] %v1053
        %1086 = vst [vmem:[%s248 + $0xa0] sm:$0xff] %v1054
        %1087 = vst [vmem:[%s248 + $0xa8] sm:$0xff] %v1055
        %1088 = vst [vmem:[%s248 + $0xb0] sm:$0xff] %v1056
        %1089 = vst [vmem:[%s248 + $0xb8] sm:$0xff] %v1057
        %1090 = vst [vmem:[%s248 + $0xc0] sm:$0xff] %v1058
        %1091 = vst [vmem:[%s248 + $0xc8] sm:$0xff] %v1059
        %1092 = vst [vmem:[%s248 + $0xd0] sm:$0xff] %v1060
        %1093 = vst [vmem:[%s248 + $0xd8] sm:$0xff] %v1061
        %1094 = vst [vmem:[%s248 + $0xe0] sm:$0xff] %v1062
        %1095 = vst [vmem:[%s248 + $0xe8] sm:$0xff] %v1063
        %1096 = vst [vmem:[%s248 + $0xf0] sm:$0xff] %v1064
        %1097 = vst [vmem:[%s248 + $0xf8] sm:$0xff] %v1065
        %p1098 = scmp.eq.s32.totalorder %s26, 1
        // Predicated region
        $region45: #{tpu_custom_call.1} parent=35 // pred_check
          %p1099 = pneg %p1098
        $region46: #{tpu_custom_call.1} parent=35 // pred_check_branch
          %1101 = sbr.rel (%p1099) target = $region48
        $region47: #{tpu_custom_call.1} parent=35 // pred_region
          %v1102 = vld [vmem:[%s248] sm:$0xff]
          %v1103 = vld [vmem:[%s248 + $0x8] sm:$0xff]
          %v1104 = vld [vmem:[%s248 + $0x10] sm:$0xff]
          %v1105 = vld [vmem:[%s248 + $0x18] sm:$0xff]
          %v1106 = vld [vmem:[%s248 + $0x20] sm:$0xff]
          %v1107 = vld [vmem:[%s248 + $0x28] sm:$0xff]
          %v1108 = vld [vmem:[%s248 + $0x30] sm:$0xff]
          %v1109 = vld [vmem:[%s248 + $0x38] sm:$0xff]
          %v1110 = vld [vmem:[%s248 + $0x40] sm:$0xff]
          %v1111 = vld [vmem:[%s248 + $0x48] sm:$0xff]
          %v1112 = vld [vmem:[%s248 + $0x50] sm:$0xff]
          %v1113 = vld [vmem:[%s248 + $0x58] sm:$0xff]
          %v1114 = vld [vmem:[%s248 + $0x60] sm:$0xff]
          %v1115 = vld [vmem:[%s248 + $0x68] sm:$0xff]
          %v1116 = vld [vmem:[%s248 + $0x70] sm:$0xff]
          %v1117 = vld [vmem:[%s248 + $0x78] sm:$0xff]
          %v1118 = vld [vmem:[%s248 + $0x80] sm:$0xff]
          %v1119 = vld [vmem:[%s248 + $0x88] sm:$0xff]
          %v1120 = vld [vmem:[%s248 + $0x90] sm:$0xff]
          %v1121 = vld [vmem:[%s248 + $0x98] sm:$0xff]
          %v1122 = vld [vmem:[%s248 + $0xa0] sm:$0xff]
          %v1123 = vld [vmem:[%s248 + $0xa8] sm:$0xff]
          %v1124 = vld [vmem:[%s248 + $0xb0] sm:$0xff]
          %v1125 = vld [vmem:[%s248 + $0xb8] sm:$0xff]
          %v1126 = vld [vmem:[%s248 + $0xc0] sm:$0xff]
          %v1127 = vld [vmem:[%s248 + $0xc8] sm:$0xff]
          %v1128 = vld [vmem:[%s248 + $0xd0] sm:$0xff]
          %v1129 = vld [vmem:[%s248 + $0xd8] sm:$0xff]
          %v1130 = vld [vmem:[%s248 + $0xe0] sm:$0xff]
          %v1131 = vld [vmem:[%s248 + $0xe8] sm:$0xff]
          %v1132 = vld [vmem:[%s248 + $0xf0] sm:$0xff]
          %v1133 = vld [vmem:[%s248 + $0xf8] sm:$0xff]
          %v1134 = vld [vmem:[%s3] sm:$0x1]
          %v1136 = vlaneseq
          %v1137 = vshrl.u32 %v1136, 7
          %v1138 = vsub.s32 0, %v1137
          %v1139 = vrot.slane %v1134, %v1138
          %v1141 = vadd.f32 %v1102, %v1139
          %v1142 = vadd.f32 %v1103, %v1139
          %v1143 = vadd.f32 %v1104, %v1139
          %v1144 = vadd.f32 %v1105, %v1139
          %v1145 = vadd.f32 %v1106, %v1139
          %v1146 = vadd.f32 %v1107, %v1139
          %v1147 = vadd.f32 %v1108, %v1139
          %v1148 = vadd.f32 %v1109, %v1139
          %v1149 = vadd.f32 %v1110, %v1139
          %v1150 = vadd.f32 %v1111, %v1139
          %v1151 = vadd.f32 %v1112, %v1139
          %v1152 = vadd.f32 %v1113, %v1139
          %v1153 = vadd.f32 %v1114, %v1139
          %v1154 = vadd.f32 %v1115, %v1139
          %v1155 = vadd.f32 %v1116, %v1139
          %v1156 = vadd.f32 %v1117, %v1139
          %v1157 = vadd.f32 %v1118, %v1139
          %v1158 = vadd.f32 %v1119, %v1139
          %v1159 = vadd.f32 %v1120, %v1139
          %v1160 = vadd.f32 %v1121, %v1139
          %v1161 = vadd.f32 %v1122, %v1139
          %v1162 = vadd.f32 %v1123, %v1139
          %v1163 = vadd.f32 %v1124, %v1139
          %v1164 = vadd.f32 %v1125, %v1139
          %v1165 = vadd.f32 %v1126, %v1139
          %v1166 = vadd.f32 %v1127, %v1139
          %v1167 = vadd.f32 %v1128, %v1139
          %v1168 = vadd.f32 %v1129, %v1139
          %v1169 = vadd.f32 %v1130, %v1139
          %v1170 = vadd.f32 %v1131, %v1139
          %v1171 = vadd.f32 %v1132, %v1139
          %v1172 = vadd.f32 %v1133, %v1139
          %1173 = vst [vmem:[%s248] sm:$0xff] %v1141
          %1174 = vst [vmem:[%s248 + $0x8] sm:$0xff] %v1142
          %1175 = vst [vmem:[%s248 + $0x10] sm:$0xff] %v1143
          %1176 = vst [vmem:[%s248 + $0x18] sm:$0xff] %v1144
          %1177 = vst [vmem:[%s248 + $0x20] sm:$0xff] %v1145
          %1178 = vst [vmem:[%s248 + $0x28] sm:$0xff] %v1146
          %1179 = vst [vmem:[%s248 + $0x30] sm:$0xff] %v1147
          %1180 = vst [vmem:[%s248 + $0x38] sm:$0xff] %v1148
          %1181 = vst [vmem:[%s248 + $0x40] sm:$0xff] %v1149
          %1182 = vst [vmem:[%s248 + $0x48] sm:$0xff] %v1150
          %1183 = vst [vmem:[%s248 + $0x50] sm:$0xff] %v1151
          %1184 = vst [vmem:[%s248 + $0x58] sm:$0xff] %v1152
          %1185 = vst [vmem:[%s248 + $0x60] sm:$0xff] %v1153
          %1186 = vst [vmem:[%s248 + $0x68] sm:$0xff] %v1154
          %1187 = vst [vmem:[%s248 + $0x70] sm:$0xff] %v1155
          %1188 = vst [vmem:[%s248 + $0x78] sm:$0xff] %v1156
          %1189 = vst [vmem:[%s248 + $0x80] sm:$0xff] %v1157
          %1190 = vst [vmem:[%s248 + $0x88] sm:$0xff] %v1158
          %1191 = vst [vmem:[%s248 + $0x90] sm:$0xff] %v1159
          %1192 = vst [vmem:[%s248 + $0x98] sm:$0xff] %v1160
          %1193 = vst [vmem:[%s248 + $0xa0] sm:$0xff] %v1161
          %1194 = vst [vmem:[%s248 + $0xa8] sm:$0xff] %v1162
          %1195 = vst [vmem:[%s248 + $0xb0] sm:$0xff] %v1163
          %1196 = vst [vmem:[%s248 + $0xb8] sm:$0xff] %v1164
          %1197 = vst [vmem:[%s248 + $0xc0] sm:$0xff] %v1165
          %1198 = vst [vmem:[%s248 + $0xc8] sm:$0xff] %v1166
          %1199 = vst [vmem:[%s248 + $0xd0] sm:$0xff] %v1167
          %1200 = vst [vmem:[%s248 + $0xd8] sm:$0xff] %v1168
          %1201 = vst [vmem:[%s248 + $0xe0] sm:$0xff] %v1169
          %1202 = vst [vmem:[%s248 + $0xe8] sm:$0xff] %v1170
          %1203 = vst [vmem:[%s248 + $0xf0] sm:$0xff] %v1171
          %1204 = vst [vmem:[%s248 + $0xf8] sm:$0xff] %v1172
        $region48: #{tpu_custom_call.1} parent=35 // pred_fallthru
          _
        %s1205 = sand.u32 %s137, 1
        %s1206 = scalar_lea.sflag [#allocation4], %s1205
        %s1207 = sand.u32 %s137, 1
        %s1208 = smul.addr %s1207, 256
        %s1209 = scalar_lea.vmem [#allocation5], %s1208
        // Predicated region
        $region49: #{tpu_custom_call.1} parent=35 // pred_check
          %p1210 = pneg %p147
        $region50: #{tpu_custom_call.1} parent=35 // pred_check_branch
          %1212 = sbr.rel (%p1210) target = $region52
        $region51: #{tpu_custom_call.1} parent=35 // pred_region
          %s1213 = smul.u32 32, %s25
          %s1215 = ssub.s32 4096, 4096
          %1216 = vsyncadd %s1206, %s1215
          %s1217 = smul.addr %s1213, 128
          %s1218 = scalar_lea.hbm %s4, %s1217
          %s1219 = sshll.u32 %s1209, 4
          %s1220 = int_to_ptr.vmem [resolvable:$true] %s1219
          %1225 = dma.vmem_to_hbm [thread:$0]  %s1220, 4096, %s1218, %s1206, 128, 128, 8
        $region52: #{tpu_custom_call.1} parent=35 // pred_fallthru
          _
      $region36: #{tpu_custom_call.1} parent=5 // pred_fallthru
        _
      %p1226 = scmp.le.s32.totalorder 2, %s16
      // Predicated region
      $region53: #{tpu_custom_call.1} parent=5 // pred_check
        %p1227 = pneg %p1226
      $region54: #{tpu_custom_call.1} parent=5 // pred_check_branch
        %1229 = sbr.rel (%p1227) target = $region56
      $region55: #{tpu_custom_call.1} parent=5 // pred_region
        %s1230 = ssub.s32 %s16, 2
        // Predicated region
        $region57: #{tpu_custom_call.1} parent=55 // pred_check
          %p1231 = pneg %p153
        $region58: #{tpu_custom_call.1} parent=55 // pred_check_branch
          %1233 = sbr.rel (%p1231) target = $region60
        $region59: #{tpu_custom_call.1} parent=55 // pred_region
          %s1234 = sand.u32 %s138, 1
          %s1235 = scalar_lea.sflag [#allocation4], %s1234
          %s1236 = sand.u32 %s138, 1
          %s1237 = smul.addr %s1236, 256
          %s1238 = scalar_lea.vmem [#allocation5], %s1237
          %1239 = dma.done %s1235, 4096
        $region60: #{tpu_custom_call.1} parent=55 // pred_fallthru
          _
      $region56: #{tpu_custom_call.1} parent=5 // pred_fallthru
        _
    $region6: #{tpu_custom_call.1} parent=1 // loop_footer
      %s20 = sadd.s32 1, %s16
    $region7: #{tpu_custom_call.1} parent=1 // loop_footer_branch
      %15 = sbr.rel target = $region3
    $region8: #{tpu_custom_call.1} parent=1 // loop_exit
      _
    %1240 = vsyncpa [#allocation3], 1
    %s1241 = scalar_lea.sflag [#allocation3], 1
    %1242 = vsyncpa %s1241, 1
    %1243 = vsyncpa [#allocation4], 1
    %s1244 = scalar_lea.sflag [#allocation4], 1
    %1245 = vsyncpa %s1244, 1

</llo_original>
